<compile_context>
chip_gen: v7x
topology: tpu7x:2x2x1
jax: 0.10.0
libtpu: 0.0.40
codegen_flags: <defaults>
</compile_context>

<pallas_src>
import functools

import jax
import jax.numpy as jnp
from jax.experimental import pallas as pl
from jax.experimental.pallas import tpu as pltpu

_LANES = 128
_TILE_ROWS = 4096          # (4096, 128) f32 = 2 MiB per input per pipeline buffer
_NUM_CORE_SPLITS = 2       # leading "parallel" axis: 2 TCs on v7x, outer loop elsewhere


def _sigmoid(x):
    # sigmoid(x) == 0.5 * tanh(x/2) + 0.5  -> single EUP op, no divide on VALU.
    return 0.5 * jnp.tanh(0.5 * x) + 0.5


def _mask_invalid(s, t, base_row, n_valid, rows):
    """Zero out elements whose flat index >= n_valid (lane pad / block overhang)."""
    row = jax.lax.broadcasted_iota(jnp.int32, (rows, _LANES), 0)
    lane = jax.lax.broadcasted_iota(jnp.int32, (rows, _LANES), 1)
    gidx = (base_row + row) * _LANES + lane
    valid = gidx < n_valid
    return jnp.where(valid, s, 0.0), jnp.where(valid, t, 0.0)


def _dice_single_kernel(x_ref, t_ref, o_ref, *, smooth, n_valid, need_mask):
    """Whole problem in one block: grid=(1,), no scratch."""
    x = x_ref[...].astype(jnp.float32)
    t = t_ref[...].astype(jnp.float32)
    s = _sigmoid(x)
    if need_mask:
        s, t = _mask_invalid(s, t, 0, n_valid, x_ref.shape[0])
    inter = jnp.sum(s * t)
    denom = jnp.sum(s + t) + smooth
    o_ref[0, 0] = (2.0 * inter + smooth) / denom


def _dice_tiled_kernel(x_ref, t_ref, o_ref, acc_st, acc_d, *,
                       n_valid, tile_rows, blocks_per_core, full_blocks,
                       any_masked):
    """Tiled reduction over grid=(cores, blocks_per_core).

    x_ref/t_ref: (tile_rows, 128) input tiles (native dtype, cast in-kernel)
    o_ref:       (1, 2, 128) per-core partial block: row 0 = intersection
                 lane-partials, row 1 = denominator lane-partials.
    acc_st/acc_d: (1, 128) f32 VMEM vector accumulators.
    """
    c = pl.program_id(0)
    i = pl.program_id(1)
    g = c * blocks_per_core + i            # global block index (may overhang)

    @pl.when(i == 0)
    def _():
        acc_st[...] = jnp.zeros_like(acc_st)
        acc_d[...] = jnp.zeros_like(acc_d)

    def accumulate(masked):
        x = x_ref[...].astype(jnp.float32)
        t = t_ref[...].astype(jnp.float32)
        s = _sigmoid(x)
        if masked:
            s, t = _mask_invalid(s, t, g * tile_rows, n_valid, tile_rows)
        # Register-resident tile reduction; only one vreg store per acc per tile.
        acc_st[...] += jnp.sum(s * t, axis=0, keepdims=True)
        acc_d[...] += jnp.sum(s + t, axis=0, keepdims=True)

    if any_masked:
        @pl.when(g < full_blocks)
        def _():
            accumulate(False)

        @pl.when(g >= full_blocks)
        def _():
            accumulate(True)
    else:
        accumulate(False)

    @pl.when(i == blocks_per_core - 1)
    def _():
        o_ref[0, 0:1, :] = acc_st[...]
        o_ref[0, 1:2, :] = acc_d[...]


def dice_score(inputs, targets, smooth=1.0):
    """Pallas TPU implementation of DiceScore.forward. Returns a f32 scalar."""
    x = jnp.ravel(inputs)                  # native dtype; cast to f32 in-kernel
    t = jnp.ravel(targets)
    n = x.shape[0]
    smooth = float(smooth)

    # Only a (rare) lane remainder gets padded; padded elements are masked
    # out inside the kernel, so the pad values are irrelevant.
    lane_pad = (-n) % _LANES
    if lane_pad:
        x = jnp.pad(x, (0, lane_pad))
        t = jnp.pad(t, (0, lane_pad))
    rows = (n + lane_pad) // _LANES
    x2 = x.reshape(rows, _LANES)
    t2 = t.reshape(rows, _LANES)

    if rows <= _TILE_ROWS:
        # Single block, grid=(1,), no scratch.
        need_mask = lane_pad != 0
        kernel = functools.partial(
            _dice_single_kernel, smooth=smooth, n_valid=n, need_mask=need_mask)
        out = pl.pallas_call(
            kernel,
            out_shape=jax.ShapeDtypeStruct((1, 1), jnp.float32),
            grid_spec=pltpu.PrefetchScalarGridSpec(
                num_scalar_prefetch=0,
                grid=(1,),
                in_specs=[
                    pl.BlockSpec((rows, _LANES), lambda i: (0, 0)),
                    pl.BlockSpec((rows, _LANES), lambda i: (0, 0)),
                ],
                out_specs=pl.BlockSpec(
                    (1, 1), lambda i: (0, 0), memory_space=pltpu.SMEM),
            ),
            compiler_params=pltpu.CompilerParams(
                dimension_semantics=("arbitrary",)),
        )(x2, t2)
        return out[0, 0]

    # Tiled path: 2-way core split (parallel) x sequential reduction (arbitrary).
    num_blocks = pl.cdiv(rows, _TILE_ROWS)
    bpc = pl.cdiv(num_blocks, _NUM_CORE_SPLITS)            # blocks per core
    full_blocks = n // (_TILE_ROWS * _LANES)                # fully-valid blocks
    any_masked = full_blocks < _NUM_CORE_SPLITS * bpc

    def in_map(c, i):
        g = c * bpc + i
        return (jnp.minimum(g, num_blocks - 1), 0)          # keep DMA in-bounds

    kernel = functools.partial(
        _dice_tiled_kernel, n_valid=n, tile_rows=_TILE_ROWS,
        blocks_per_core=bpc, full_blocks=full_blocks, any_masked=any_masked)

    partials = pl.pallas_call(
        kernel,
        out_shape=jax.ShapeDtypeStruct((_NUM_CORE_SPLITS, 2, _LANES), jnp.float32),
        grid_spec=pltpu.PrefetchScalarGridSpec(
            num_scalar_prefetch=0,
            grid=(_NUM_CORE_SPLITS, bpc),
            in_specs=[
                pl.BlockSpec((_TILE_ROWS, _LANES), in_map),
                pl.BlockSpec((_TILE_ROWS, _LANES), in_map),
            ],
            out_specs=pl.BlockSpec((1, 2, _LANES), lambda c, i: (c, 0, 0)),
            scratch_shapes=[
                pltpu.VMEM((1, _LANES), jnp.float32),
                pltpu.VMEM((1, _LANES), jnp.float32),
            ],
        ),
        compiler_params=pltpu.CompilerParams(
            dimension_semantics=("parallel", "arbitrary"),
            vmem_limit_bytes=32 * 1024 * 1024),
    )(x2, t2)

    inter = jnp.sum(partials[:, 0, :])
    denom = jnp.sum(partials[:, 1, :])
    return (2.0 * inter + smooth) / (denom + smooth)


def _reference(inputs, targets, smooth=1.0):
    s = jax.nn.sigmoid(inputs.astype(jnp.float32)).ravel()
    t = targets.astype(jnp.float32).ravel()
    inter = jnp.sum(s * t)
    return (2.0 * inter + smooth) / (jnp.sum(s) + jnp.sum(t) + smooth)


if __name__ == "__main__":
    key = jax.random.PRNGKey(0)
    k1, k2, k3, k4 = jax.random.split(key, 4)

    # NCHW logits and binary target masks, as the PyTorch forward implies.
    x = jax.random.normal(k1, (2, 4, 16, 16), dtype=jnp.float32)
    t = (jax.random.uniform(k2, (2, 4, 16, 16)) > 0.5).astype(jnp.float32)
    dice = dice_score(x, t, smooth=1.0)
    jax.block_until_ready(dice)
    ref = _reference(x, t, smooth=1.0)
    assert jnp.allclose(dice, ref, atol=1e-5, rtol=1e-5), (dice, ref)

    # Exercise the tiled/megacore path: odd block count, partial last block,
    # and one clamped overhang tile on the second core split.
    xl = jax.random.normal(k3, (4, 8, 256, 129), dtype=jnp.float32)
    tl = (jax.random.uniform(k4, (4, 8, 256, 129)) > 0.5).astype(jnp.float32)
    dl = dice_score(xl, tl, smooth=1.0)
    jax.block_until_ready(dl)
    rl = _reference(xl, tl, smooth=1.0)
    assert jnp.allclose(dl, rl, atol=1e-5, rtol=1e-5), (dl, rl)

    # Exercise the lane-ragged single-block path (n not a multiple of 128).
    xs = jax.random.normal(k1, (3, 7, 11, 5), dtype=jnp.float32)
    ts = (jax.random.uniform(k2, (3, 7, 11, 5)) > 0.5).astype(jnp.float32)
    d_s = dice_score(xs, ts, smooth=1.0)
    jax.block_until_ready(d_s)
    r_s = _reference(xs, ts, smooth=1.0)
    assert jnp.allclose(d_s, r_s, atol=1e-5, rtol=1e-5), (d_s, r_s)

    print("KERNEL_OK")
</pallas_src>

<mosaic_0001>
module attributes {stable_mosaic.version = 11 : i64} {
  func.func @_dice_single_kernel(%arg0: i32, %arg1: memref<16x128xf32, #tpu.memory_space<vmem>>, %arg2: memref<16x128xf32, #tpu.memory_space<vmem>>, %arg3: memref<1x1xf32, #tpu.memory_space<smem>>) attributes {dimension_semantics = [#tpu.dimension_semantics<arbitrary>], iteration_bounds = array<i64: 1>, scalar_prefetch = 0 : i64, scratch_operands = 0 : i64, tpu.core_type = #tpu.core_type<tc>, window_params = [{pipeline_mode = #tpu.pipeline_mode<synchronous>, transform_indices = @transform_0, window_bounds = array<i64: 16, 128>}, {pipeline_mode = #tpu.pipeline_mode<synchronous>, transform_indices = @transform_1, window_bounds = array<i64: 16, 128>}, {transform_indices = @transform_2, window_bounds = array<i64: 1, 1>}]} {
    %c0 = arith.constant 0 : index
    %c0_0 = arith.constant 0 : index
    %0 = vector.load %arg1[%c0, %c0_0] : memref<16x128xf32, #tpu.memory_space<vmem>>, vector<16x128xf32>
    %c0_1 = arith.constant 0 : index
    %c0_2 = arith.constant 0 : index
    %1 = vector.load %arg2[%c0_1, %c0_2] : memref<16x128xf32, #tpu.memory_space<vmem>>, vector<16x128xf32>
    %cst = arith.constant 5.000000e-01 : f32
    %2 = vector.broadcast %cst : f32 to vector<16x128xf32>
    %3 = arith.mulf %2, %0 : vector<16x128xf32>
    %4 = math.tanh %3 : vector<16x128xf32>
    %cst_3 = arith.constant 5.000000e-01 : f32
    %5 = vector.broadcast %cst_3 : f32 to vector<16x128xf32>
    %6 = arith.mulf %5, %4 : vector<16x128xf32>
    %cst_4 = arith.constant 5.000000e-01 : f32
    %7 = vector.broadcast %cst_4 : f32 to vector<16x128xf32>
    %8 = arith.addf %6, %7 : vector<16x128xf32>
    %9 = arith.mulf %8, %1 : vector<16x128xf32>
    %10 = vector.shape_cast %9 : vector<16x128xf32> to vector<1x16x128xf32>
    %cst_5 = arith.constant dense<0.000000e+00> : vector<1xf32>
    %11 = vector.multi_reduction <add>, %10, %cst_5 [1, 2] : vector<1x16x128xf32> to vector<1xf32>
    %12 = vector.shape_cast %11 : vector<1xf32> to vector<1x1x1xf32>
    %13 = vector.extract %12[0, 0, 0] : f32 from vector<1x1x1xf32>
    %14 = arith.addf %8, %1 : vector<16x128xf32>
    %15 = vector.shape_cast %14 : vector<16x128xf32> to vector<1x16x128xf32>
    %cst_6 = arith.constant dense<0.000000e+00> : vector<1xf32>
    %16 = vector.multi_reduction <add>, %15, %cst_6 [1, 2] : vector<1x16x128xf32> to vector<1xf32>
    %17 = vector.shape_cast %16 : vector<1xf32> to vector<1x1x1xf32>
    %18 = vector.extract %17[0, 0, 0] : f32 from vector<1x1x1xf32>
    %cst_7 = arith.constant 1.000000e+00 : f32
    %19 = arith.addf %18, %cst_7 : f32
    %cst_8 = arith.constant 2.000000e+00 : f32
    %20 = arith.mulf %cst_8, %13 : f32
    %cst_9 = arith.constant 1.000000e+00 : f32
    %21 = arith.addf %20, %cst_9 : f32
    %22 = arith.divf %21, %19 : f32
    %c0_10 = arith.constant 0 : index
    %c0_11 = arith.constant 0 : index
    %23 = memref.load %arg3[%c0_10, %c0_11] : memref<1x1xf32, #tpu.memory_space<smem>>
    memref.store %22, %arg3[%c0_10, %c0_11] : memref<1x1xf32, #tpu.memory_space<smem>>
    return
  }
  func.func @transform_0(%arg0: i32) -> (i32, i32) {
    %c0_i32 = arith.constant 0 : i32
    %c0_i32_0 = arith.constant 0 : i32
    %c0_i32_1 = arith.constant 0 : i32
    return %c0_i32, %c0_i32_0 : i32, i32
  }
  func.func @transform_1(%arg0: i32) -> (i32, i32) {
    %c0_i32 = arith.constant 0 : i32
    %c0_i32_0 = arith.constant 0 : i32
    %c0_i32_1 = arith.constant 0 : i32
    return %c0_i32, %c0_i32_0 : i32, i32
  }
  func.func @transform_2(%arg0: i32) -> (i32, i32) {
    %c0_i32 = arith.constant 0 : i32
    %c0_i32_0 = arith.constant 0 : i32
    %c0_i32_1 = arith.constant 0 : i32
    return %c0_i32, %c0_i32_0 : i32, i32
  }
}

</mosaic_0001>

<llo_original>
// kernel: tpu_custom_call.1
$region0: #{tpu_custom_call.1}
  #allocation0 [shape = 'u32[]', space=smem, size = 0x4, offset = 0x4, fixed_abs, tag = 'smem constant byte address 0x4 - core index']
  #allocation1 [shape = 'u32[144,128]{1,0:T(1,128)}', space=vmem, size = 0x12000, scoped, tag = 'internal scratch']
  %s0 = inlined_call_operand.hbm [shape: f32[16,128], index: 0, kind: input, shape index: {}]
  %s1 = inlined_call_operand.hbm [shape: f32[16,128], index: 1, kind: input, shape index: {}]
  %s2 = inlined_call_operand.hbm [shape: f32[1,1], index: 2, kind: output, shape index: {}]
  %s3 = sld [smem:[#allocation0]]
  $region26: #{tpu_custom_call.1} parent=0
    _
  %s5 = ssub.s32 1, %s3
  %s6 = scalar_select 0, %s5, %s3
  $region1: #{tpu_custom_call.1} parent=0
    #allocation2 [shape = 'u8[8192]{0}', space=vmem, size = 0x2000, scoped, tag = 'input window, operand 0, single buffered']
    #allocation3 [shape = 's32[1]{0}', space=sflag, size = 0x4, scoped, tag = 'scoped memory for tpu_custom_call.1']
    #allocation4 [shape = 's32[1]{0}', space=sflag, size = 0x4, scoped, tag = 'scoped memory for tpu_custom_call.1']
    #allocation5 [shape = 'u8[8192]{0}', space=vmem, size = 0x2000, scoped, tag = 'input window, operand 1, single buffered']
    #allocation6 [shape = 's32[1]{0}', space=sflag, size = 0x4, scoped, tag = 'scoped memory for tpu_custom_call.1']
    #allocation7 [shape = 'u8[512]{0}', space=smem, size = 0x200, scoped, tag = 'output window, operand 0, single buffered']
    %7 = vsyncpa [#allocation3], 0
    %8 = vsyncpa [#allocation6], 0
    %9 = vsyncpa [#allocation4], 0
    // Predicated region
    $region2: #{tpu_custom_call.1} parent=1 // pred_check
      _
    $region3: #{tpu_custom_call.1} parent=1 // pred_check_branch
      %11 = sbr.rel (0) target = $region5
    $region4: #{tpu_custom_call.1} parent=1 // pred_region
      %s13 = ssub.s32 256, 256
      %14 = vsyncadd [#allocation3], %s13
      %s15 = sshll.u32 [#allocation2], 4
      %s16 = int_to_ptr.vmem [resolvable:$true] %s15
      %21 = dma.hbm_to_vmem [thread:$0]  %s0, 256, %s16, [#allocation3], 128, 128, 8
    $region5: #{tpu_custom_call.1} parent=1 // pred_fallthru
      _
    // Predicated region
    $region6: #{tpu_custom_call.1} parent=1 // pred_check
      _
    $region7: #{tpu_custom_call.1} parent=1 // pred_check_branch
      %23 = sbr.rel (0) target = $region9
    $region8: #{tpu_custom_call.1} parent=1 // pred_region
      %s25 = ssub.s32 256, 256
      %26 = vsyncadd [#allocation6], %s25
      %s27 = sshll.u32 [#allocation5], 4
      %s28 = int_to_ptr.vmem [resolvable:$true] %s27
      %33 = dma.hbm_to_vmem [thread:$0]  %s1, 256, %s28, [#allocation6], 128, 128, 8
    $region9: #{tpu_custom_call.1} parent=1 // pred_fallthru
      _
    // Predicated region
    $region10: #{tpu_custom_call.1} parent=1 // pred_check
      _
    $region11: #{tpu_custom_call.1} parent=1 // pred_check_branch
      %35 = sbr.rel (0) target = $region13
    $region12: #{tpu_custom_call.1} parent=1 // pred_region
      %36 = dma.done [#allocation3], 256
    $region13: #{tpu_custom_call.1} parent=1 // pred_fallthru
      _
    // Predicated region
    $region14: #{tpu_custom_call.1} parent=1 // pred_check
      _
    $region15: #{tpu_custom_call.1} parent=1 // pred_check_branch
      %38 = sbr.rel (0) target = $region17
    $region16: #{tpu_custom_call.1} parent=1 // pred_region
      %39 = dma.done [#allocation6], 256
    $region17: #{tpu_custom_call.1} parent=1 // pred_fallthru
      _
    %v40 = vld [vmem:[#allocation2] sm:$0xff]
    %v41 = vld [vmem:[#allocation2 + $0x8] sm:$0xff]
    %v42 = vld [vmem:[#allocation5] sm:$0xff]
    %v43 = vld [vmem:[#allocation5 + $0x8] sm:$0xff]
    %v44 = vmul.f32 %v40, 0.5
    %v45 = vmul.f32 %v41, 0.5
    %v46 = vtanh.pop %v44
    %v47 = vtanh.pop %v45
    %v48 = vmul.f32 %v46, 0.5
    %v49 = vmul.f32 %v47, 0.5
    %v50 = vadd.f32 %v48, 0.5
    %v51 = vadd.f32 %v49, 0.5
    %v52 = vmul.f32 %v50, %v42
    %v53 = vmul.f32 %v51, %v43
    %v54 = vadd.f32 %v52, %v53
    %55 = vadd.xlane.f32.xlu0 %v54
    %v56 = vpop.xlane.xlu0 %55
    %v57 = vrot.slane %v56, 4
    %v58 = vadd.f32 %v56, %v57
    %v59 = vrot.slane %v58, 2
    %v60 = vadd.f32 %v58, %v59
    %v61 = vrot.slane %v60, 1
    %v62 = vadd.f32 %v60, %v61
    %s63 = vtos %v62
    %v64 = vadd.f32 %v50, %v42
    %v65 = vadd.f32 %v51, %v43
    %v66 = vadd.f32 %v64, %v65
    %67 = vadd.xlane.f32.xlu0 %v66
    %v68 = vpop.xlane.xlu0 %67
    %v69 = vrot.slane %v68, 4
    %v70 = vadd.f32 %v68, %v69
    %v71 = vrot.slane %v70, 2
    %v72 = vadd.f32 %v70, %v71
    %v73 = vrot.slane %v72, 1
    %v74 = vadd.f32 %v72, %v73
    %s75 = vtos %v74
    %s76 = sadd.f32 %s75, 1.0
    %s77 = smul.f32 %s63, 2.0
    %s78 = sadd.f32 %s77, 1.0
    %v79 = vstv %s76
    %v80 = vrcp.pop %v79
    %s81 = vtos %v80
    %s82 = smul.f32 %s78, %s81
    %s83 = scalar_lea.smem [#allocation7], 0
    %84 = sst [smem:[%s83]] %s82
    // Predicated region
    $region18: #{tpu_custom_call.1} parent=1 // pred_check
      _
    $region19: #{tpu_custom_call.1} parent=1 // pred_check_branch
      %86 = sbr.rel (0) target = $region21
    $region20: #{tpu_custom_call.1} parent=1 // pred_region
      %s88 = ssub.s32 16, 16
      %89 = vsyncadd [#allocation4], %s88
      %92 = dma.smem_to_hbm [#allocation7], 16, %s2, [#allocation4]
    $region21: #{tpu_custom_call.1} parent=1 // pred_fallthru
      _
    // Predicated region
    $region22: #{tpu_custom_call.1} parent=1 // pred_check
      _
    $region23: #{tpu_custom_call.1} parent=1 // pred_check_branch
      %94 = sbr.rel (0) target = $region25
    $region24: #{tpu_custom_call.1} parent=1 // pred_region
      %95 = dma.done [#allocation4], 16
    $region25: #{tpu_custom_call.1} parent=1 // pred_fallthru
      _
    %96 = sfence
    %97 = vsyncpa [#allocation3], 1
    %98 = vsyncpa [#allocation6], 1
    %99 = vsyncpa [#allocation4], 1

</llo_original>
